<compile_context>
chip_gen: v7x
topology: tpu7x:2x2x1
jax: 0.10.0
libtpu: 0.0.40
codegen_flags: <defaults>
</compile_context>

<pallas_src>
import jax
import jax.numpy as jnp
from jax import lax
from jax.experimental import pallas as pl
from jax.experimental.pallas import tpu as pltpu

# ----- model hyperparameters (match Net(d, nNodes, nHidden, device)) -----
D = 4            # input features
N_NODES = 32     # hidden width
N_HIDDEN = 3     # -> N_H2H = 2 hidden-to-hidden Linear layers
N_H2H = N_HIDDEN - 1
B = 16           # batch


def _round_up(x, m):
    return (x + m - 1) // m * m


# ----- packed parameter slab layout (rows of width N_NODES, f32) -----
# rows [i*N .. i*N+N)      : w_h[i]           (N_NODES, N_NODES), i = 0..N_H2H-1
# rows [_ROW_WIN .. +D)    : w_in             (D, N_NODES)   (padded to 8 rows)
# 8-row "vector" tile at _ROW_VECS (sublane-aligned):
#   row +0                 : b_in             (N_NODES,)
#   row +1+i               : b_h[i]           (N_NODES,)
#   row +1+N_H2H           : w_out^T          (N_NODES,)
#   row +2+N_H2H           : b_out replicated (N_NODES,)
_ROW_WH = [i * N_NODES for i in range(N_H2H)]
_ROW_WIN = N_H2H * N_NODES
_ROW_VECS = _ROW_WIN + _round_up(D, 8)
_N_ROWS = _ROW_VECS + 8
assert 3 + N_H2H <= 8, "vector rows must fit in one aligned 8-row tile"


def _silu(x):
    return x * jax.nn.sigmoid(x)


def mlp_kernel(x_ref, p_ref, y_ref):
    # x_ref: (B, D) f32; p_ref: (_N_ROWS, N_NODES) packed params; y_ref: (1, B)
    x = x_ref[...]                                           # (B, D)

    # aligned 8-row tile holding all the small vectors (one tile load)
    vecs = p_ref[_ROW_VECS:_ROW_VECS + 8, :]                 # (8, N_NODES)
    b_in = vecs[0:1, :]                                      # (1, N_NODES)
    w_out_row = vecs[1 + N_H2H:2 + N_H2H, :]                 # (1, N_NODES) == w_out^T
    b_out = vecs[2 + N_H2H:3 + N_H2H, 0:1]                   # (1, 1)

    # ---- input layer: K = D = 4 -> VPU broadcast-FMAs, skip the padded MXU pass ----
    w_in = p_ref[_ROW_WIN:_ROW_WIN + D, :]                   # (D, N_NODES)
    h = b_in
    for k in range(D):
        h = h + x[:, k:k + 1] * w_in[k:k + 1, :]             # (B,1)*(1,N) -> (B,N)
    h = _silu(h)

    # ---- hidden-to-hidden layers on the MXU ----
    for i in range(N_H2H):
        w = p_ref[_ROW_WH[i]:_ROW_WH[i] + N_NODES, :]        # (N_NODES, N_NODES)
        b = vecs[1 + i:2 + i, :]                             # (1, N_NODES)
        h = _silu(jnp.dot(h, w, preferred_element_type=jnp.float32) + b)

    # ---- output head, lane-dense: y_row[0, b] = sum_n h[b, n] * w_out[n] + b_out ----
    y_row = lax.dot_general(w_out_row, h,
                            dimension_numbers=(((1,), (1,)), ((), ())),
                            preferred_element_type=jnp.float32)   # (1, B)
    y_ref[...] = y_row + b_out


def pack_params(params):
    """Pack all Linear weights/biases into one (_N_ROWS, N_NODES) f32 slab."""
    w_in, b_in, w_h, b_h, w_out, b_out = params
    slab = jnp.zeros((_N_ROWS, N_NODES), jnp.float32)
    for i in range(N_H2H):
        slab = slab.at[_ROW_WH[i]:_ROW_WH[i] + N_NODES, :].set(w_h[i])
        slab = slab.at[_ROW_VECS + 1 + i, :].set(b_h[i])
    slab = slab.at[_ROW_WIN:_ROW_WIN + D, :].set(w_in)
    slab = slab.at[_ROW_VECS, :].set(b_in.reshape(-1))
    slab = slab.at[_ROW_VECS + 1 + N_H2H, :].set(w_out[:, 0])
    slab = slab.at[_ROW_VECS + 2 + N_H2H, :].set(b_out[0, 0])   # replicated scalar
    return slab


@jax.jit
def net_forward(x, packed_params):
    b = x.shape[0]
    y_row = pl.pallas_call(
        mlp_kernel,
        out_shape=jax.ShapeDtypeStruct((1, b), jnp.float32),
        in_specs=[
            pl.BlockSpec(memory_space=pltpu.MemorySpace.VMEM),   # x, one DMA
            pl.BlockSpec(memory_space=pltpu.MemorySpace.VMEM),   # packed params, one DMA
        ],
        out_specs=pl.BlockSpec(memory_space=pltpu.MemorySpace.VMEM),
    )(x, packed_params)
    # lane-dense (1, B) row back to the module's (B, 1) output shape
    return y_row.reshape(b, 1)


def init_params(key):
    """Deterministic synthetic params (PyTorch Linear-like uniform init).
    Weights are stored (in_features, out_features), i.e. already transposed vs torch."""
    ks = jax.random.split(key, 6)

    def unif(k, shape, fan_in):
        bound = 1.0 / jnp.sqrt(fan_in)
        return jax.random.uniform(k, shape, jnp.float32, -bound, bound)

    w_in = unif(ks[0], (D, N_NODES), D)
    b_in = unif(ks[1], (1, N_NODES), D)
    w_h = unif(ks[2], (N_H2H, N_NODES, N_NODES), N_NODES)
    b_h = unif(ks[3], (N_H2H, N_NODES), N_NODES)
    w_out = unif(ks[4], (N_NODES, 1), N_NODES)
    b_out = unif(ks[5], (1, 1), N_NODES)
    return (w_in, b_in, w_h, b_h, w_out, b_out)


def net_forward_ref(x, params):
    """Pure-JAX reference matching Net.forward."""
    w_in, b_in, w_h, b_h, w_out, b_out = params
    h = _silu(x @ w_in + b_in)
    for i in range(N_H2H):
        h = _silu(h @ w_h[i] + b_h[i][None, :])
    return h @ w_out + b_out


if __name__ == "__main__":
    key = jax.random.PRNGKey(0)
    kx, kp = jax.random.split(key)
    x = jax.random.normal(kx, (B, D), jnp.float32)
    params = init_params(kp)
    packed = pack_params(params)

    y = net_forward(x, packed)
    y = jax.block_until_ready(y)

    y_ref = net_forward_ref(x, params)
    assert y.shape == (B, 1)
    assert jnp.allclose(y, y_ref, atol=1e-5, rtol=1e-5)
    print("KERNEL_OK")
</pallas_src>

<mosaic_0001>
module attributes {stable_mosaic.version = 11 : i64} {
  func.func @mlp_kernel(%arg0: memref<16x4xf32, #tpu.memory_space<vmem>>, %arg1: memref<80x32xf32, #tpu.memory_space<vmem>>, %arg2: memref<1x16xf32, #tpu.memory_space<vmem>>) attributes {dimension_semantics = [], scalar_prefetch = 0 : i64, scratch_operands = 0 : i64, tpu.core_type = #tpu.core_type<tc>} {
    %c0 = arith.constant 0 : index
    %c0_0 = arith.constant 0 : index
    %0 = vector.load %arg0[%c0, %c0_0] : memref<16x4xf32, #tpu.memory_space<vmem>>, vector<16x4xf32>
    %c72 = arith.constant 72 : index
    %c0_1 = arith.constant 0 : index
    %1 = vector.load %arg1[%c72, %c0_1] : memref<80x32xf32, #tpu.memory_space<vmem>>, vector<8x32xf32>
    %2 = vector.extract_strided_slice %1 {offsets = [0, 0], sizes = [1, 32], strides = [1, 1]} : vector<8x32xf32> to vector<1x32xf32>
    %3 = vector.extract_strided_slice %1 {offsets = [3, 0], sizes = [1, 32], strides = [1, 1]} : vector<8x32xf32> to vector<1x32xf32>
    %4 = vector.extract_strided_slice %1 {offsets = [4, 0], sizes = [1, 1], strides = [1, 1]} : vector<8x32xf32> to vector<1x1xf32>
    %c64 = arith.constant 64 : index
    %c0_2 = arith.constant 0 : index
    %5 = vector.load %arg1[%c64, %c0_2] : memref<80x32xf32, #tpu.memory_space<vmem>>, vector<4x32xf32>
    %6 = vector.extract_strided_slice %0 {offsets = [0, 0], sizes = [16, 1], strides = [1, 1]} : vector<16x4xf32> to vector<16x1xf32>
    %7 = vector.extract_strided_slice %5 {offsets = [0, 0], sizes = [1, 32], strides = [1, 1]} : vector<4x32xf32> to vector<1x32xf32>
    %8 = vector.broadcast %6 : vector<16x1xf32> to vector<16x32xf32>
    %9 = vector.broadcast %7 : vector<1x32xf32> to vector<16x32xf32>
    %10 = arith.mulf %8, %9 : vector<16x32xf32>
    %11 = vector.broadcast %2 : vector<1x32xf32> to vector<16x32xf32>
    %12 = arith.addf %11, %10 : vector<16x32xf32>
    %13 = vector.extract_strided_slice %0 {offsets = [0, 1], sizes = [16, 1], strides = [1, 1]} : vector<16x4xf32> to vector<16x1xf32>
    %14 = vector.extract_strided_slice %5 {offsets = [1, 0], sizes = [1, 32], strides = [1, 1]} : vector<4x32xf32> to vector<1x32xf32>
    %15 = vector.broadcast %13 : vector<16x1xf32> to vector<16x32xf32>
    %16 = vector.broadcast %14 : vector<1x32xf32> to vector<16x32xf32>
    %17 = arith.mulf %15, %16 : vector<16x32xf32>
    %18 = arith.addf %12, %17 : vector<16x32xf32>
    %19 = vector.extract_strided_slice %0 {offsets = [0, 2], sizes = [16, 1], strides = [1, 1]} : vector<16x4xf32> to vector<16x1xf32>
    %20 = vector.extract_strided_slice %5 {offsets = [2, 0], sizes = [1, 32], strides = [1, 1]} : vector<4x32xf32> to vector<1x32xf32>
    %21 = vector.broadcast %19 : vector<16x1xf32> to vector<16x32xf32>
    %22 = vector.broadcast %20 : vector<1x32xf32> to vector<16x32xf32>
    %23 = arith.mulf %21, %22 : vector<16x32xf32>
    %24 = arith.addf %18, %23 : vector<16x32xf32>
    %25 = vector.extract_strided_slice %0 {offsets = [0, 3], sizes = [16, 1], strides = [1, 1]} : vector<16x4xf32> to vector<16x1xf32>
    %26 = vector.extract_strided_slice %5 {offsets = [3, 0], sizes = [1, 32], strides = [1, 1]} : vector<4x32xf32> to vector<1x32xf32>
    %27 = vector.broadcast %25 : vector<16x1xf32> to vector<16x32xf32>
    %28 = vector.broadcast %26 : vector<1x32xf32> to vector<16x32xf32>
    %29 = arith.mulf %27, %28 : vector<16x32xf32>
    %30 = arith.addf %24, %29 : vector<16x32xf32>
    %31 = arith.negf %30 : vector<16x32xf32>
    %32 = math.exp %31 : vector<16x32xf32>
    %cst = arith.constant 1.000000e+00 : f32
    %33 = vector.broadcast %cst : f32 to vector<16x32xf32>
    %34 = arith.addf %33, %32 : vector<16x32xf32>
    %35 = arith.divf %33, %34 : vector<16x32xf32>
    %36 = arith.mulf %30, %35 : vector<16x32xf32>
    %c0_3 = arith.constant 0 : index
    %c0_4 = arith.constant 0 : index
    %37 = vector.load %arg1[%c0_3, %c0_4] : memref<80x32xf32, #tpu.memory_space<vmem>>, vector<32x32xf32>
    %38 = vector.extract_strided_slice %1 {offsets = [1, 0], sizes = [1, 32], strides = [1, 1]} : vector<8x32xf32> to vector<1x32xf32>
    %cst_5 = arith.constant dense<0.000000e+00> : vector<16x32xf32>
    %39 = tpu.matmul %36, %37, %cst_5 {dimension_numbers = #tpu.dot_dimension_numbers<[1], [0], [0], [1], [0, 0, 1, 1], [], []>} : vector<16x32xf32>, vector<32x32xf32>, vector<16x32xf32> -> vector<16x32xf32>
    %40 = vector.broadcast %38 : vector<1x32xf32> to vector<16x32xf32>
    %41 = arith.addf %39, %40 : vector<16x32xf32>
    %42 = arith.negf %41 : vector<16x32xf32>
    %43 = math.exp %42 : vector<16x32xf32>
    %cst_6 = arith.constant 1.000000e+00 : f32
    %44 = vector.broadcast %cst_6 : f32 to vector<16x32xf32>
    %45 = arith.addf %44, %43 : vector<16x32xf32>
    %46 = arith.divf %44, %45 : vector<16x32xf32>
    %47 = arith.mulf %41, %46 : vector<16x32xf32>
    %c32 = arith.constant 32 : index
    %c0_7 = arith.constant 0 : index
    %48 = vector.load %arg1[%c32, %c0_7] : memref<80x32xf32, #tpu.memory_space<vmem>>, vector<32x32xf32>
    %49 = vector.extract_strided_slice %1 {offsets = [2, 0], sizes = [1, 32], strides = [1, 1]} : vector<8x32xf32> to vector<1x32xf32>
    %cst_8 = arith.constant dense<0.000000e+00> : vector<16x32xf32>
    %50 = tpu.matmul %47, %48, %cst_8 {dimension_numbers = #tpu.dot_dimension_numbers<[1], [0], [0], [1], [0, 0, 1, 1], [], []>} : vector<16x32xf32>, vector<32x32xf32>, vector<16x32xf32> -> vector<16x32xf32>
    %51 = vector.broadcast %49 : vector<1x32xf32> to vector<16x32xf32>
    %52 = arith.addf %50, %51 : vector<16x32xf32>
    %53 = arith.negf %52 : vector<16x32xf32>
    %54 = math.exp %53 : vector<16x32xf32>
    %cst_9 = arith.constant 1.000000e+00 : f32
    %55 = vector.broadcast %cst_9 : f32 to vector<16x32xf32>
    %56 = arith.addf %55, %54 : vector<16x32xf32>
    %57 = arith.divf %55, %56 : vector<16x32xf32>
    %58 = arith.mulf %52, %57 : vector<16x32xf32>
    %cst_10 = arith.constant dense<0.000000e+00> : vector<1x16xf32>
    %59 = tpu.matmul %3, %58, %cst_10 {dimension_numbers = #tpu.dot_dimension_numbers<[1], [1], [0], [0], [0, 0, 1, 0], [], []>} : vector<1x32xf32>, vector<16x32xf32>, vector<1x16xf32> -> vector<1x16xf32>
    %60 = vector.broadcast %4 : vector<1x1xf32> to vector<1x16xf32>
    %61 = arith.addf %59, %60 : vector<1x16xf32>
    %c0_11 = arith.constant 0 : index
    %c0_12 = arith.constant 0 : index
    %62 = vector.load %arg2[%c0_11, %c0_12] : memref<1x16xf32, #tpu.memory_space<vmem>>, vector<1x16xf32>
    tpu.vector_store %arg2[%c0_11, %c0_12], %61 {strides = array<i32>} : memref<1x16xf32, #tpu.memory_space<vmem>>, vector<1x16xf32>,
    return
  }
}

</mosaic_0001>

<llo_original>
// kernel: net_forward.1
$region0: #{net_forward.1}
  #allocation0 [shape = 'u32[]', space=smem, size = 0x4, offset = 0x4, fixed_abs, tag = 'smem constant byte address 0x4 - core index']
  #allocation1 [shape = 'u32[144,128]{1,0:T(1,128)}', space=vmem, size = 0x12000, scoped, tag = 'internal scratch']
  %s0 = inlined_call_operand.vmem [shape: f32[16,4], index: 0, kind: input, shape index: {}]
  %s1 = inlined_call_operand.vmem [shape: f32[80,32], index: 1, kind: input, shape index: {}]
  %s2 = inlined_call_operand.hbm [shape: f32[1,16], index: 2, kind: output, shape index: {}]
  %s3 = sld [smem:[#allocation0]]
  $region18: #{net_forward.1} parent=0
    _
  %s5 = ssub.s32 1, %s3
  %s6 = scalar_select 0, %s5, %s3
  $region1: #{net_forward.1} parent=0
    #allocation2 [shape = 'u8[512]{0}', space=vmem, size = 0x400, scoped, tag = 'output window, operand 0, single buffered']
    #allocation3 [shape = 's32[1]{0}', space=sflag, size = 0x4, scoped, tag = 'scoped memory for net_forward.1']
    %7 = vsyncpa [#allocation3], 0
    // Predicated region
    $region2: #{net_forward.1} parent=1 // pred_check
      _
    $region3: #{net_forward.1} parent=1 // pred_check_branch
      %9 = sbr.rel (0) target = $region5
    $region4: #{net_forward.1} parent=1 // pred_region
      _
    $region5: #{net_forward.1} parent=1 // pred_fallthru
      _
    // Predicated region
    $region6: #{net_forward.1} parent=1 // pred_check
      _
    $region7: #{net_forward.1} parent=1 // pred_check_branch
      %11 = sbr.rel (0) target = $region9
    $region8: #{net_forward.1} parent=1 // pred_region
      _
    $region9: #{net_forward.1} parent=1 // pred_fallthru
      _
    %v12 = vld [vmem:[%s0] sm:$0xff]
    %v13 = vld [vmem:[%s0 + $0x8] sm:$0xff]
    %v14 = vld [vmem:[%s1 + $0x48] sm:$0xff]
    %v15 = vld [vmem:[%s1 + $0x40] sm:$0xf]
    %17 = vset.pattern.permute.xlu0 0
    %18 = vperm.xlu0 %17, %v12
    %v19 = vpop.permute.xlu0 %18
    %22 = vset.pattern.permute.xlu0 0
    %23 = vperm.xlu0 %22, %v13
    %v24 = vpop.permute.xlu0 %23
    %v26 = vlaneseq
    %v27 = vshrl.u32 %v26, 7
    %v28 = vsub.s32 0, %v27
    %v29 = vrot.slane %v15, %v28
    %v30 = vmul.f32 %v19, %v29
    %v31 = vmul.f32 %v24, %v29
    %v32 = vlaneseq
    %v33 = vshrl.u32 %v32, 7
    %v34 = vsub.s32 0, %v33
    %v35 = vrot.slane %v14, %v34
    %v36 = vadd.f32 %v35, %v30
    %v37 = vadd.f32 %v35, %v31
    %38 = vset.pattern.permute.xlu0 1
    %39 = vperm.xlu0 %38, %v12
    %v40 = vpop.permute.xlu0 %39
    %42 = vset.pattern.permute.xlu0 1
    %43 = vperm.xlu0 %42, %v13
    %v44 = vpop.permute.xlu0 %43
    %v46 = vlaneseq
    %v47 = vshrl.u32 %v46, 7
    %v48 = vsub.s32 1, %v47
    %v49 = vrot.slane %v15, %v48
    %v50 = vmul.f32 %v40, %v49
    %v51 = vmul.f32 %v44, %v49
    %v52 = vadd.f32 %v36, %v50
    %v53 = vadd.f32 %v37, %v51
    %54 = vset.pattern.permute.xlu0 2
    %55 = vperm.xlu0 %54, %v12
    %v56 = vpop.permute.xlu0 %55
    %58 = vset.pattern.permute.xlu0 2
    %59 = vperm.xlu0 %58, %v13
    %v60 = vpop.permute.xlu0 %59
    %v62 = vlaneseq
    %v63 = vshrl.u32 %v62, 7
    %v64 = vsub.s32 2, %v63
    %v65 = vrot.slane %v15, %v64
    %v66 = vmul.f32 %v56, %v65
    %v67 = vmul.f32 %v60, %v65
    %v68 = vadd.f32 %v52, %v66
    %v69 = vadd.f32 %v53, %v67
    %70 = vset.pattern.permute.xlu0 3
    %71 = vperm.xlu0 %70, %v12
    %v72 = vpop.permute.xlu0 %71
    %74 = vset.pattern.permute.xlu0 3
    %75 = vperm.xlu0 %74, %v13
    %v76 = vpop.permute.xlu0 %75
    %v78 = vlaneseq
    %v79 = vshrl.u32 %v78, 7
    %v80 = vsub.s32 3, %v79
    %v81 = vrot.slane %v15, %v80
    %v82 = vmul.f32 %v72, %v81
    %v83 = vmul.f32 %v76, %v81
    %v84 = vadd.f32 %v68, %v82
    %v85 = vadd.f32 %v69, %v83
    %v86 = vxor.u32 %v84, 2147483648
    %v87 = vxor.u32 %v85, 2147483648
    %v88 = vmul.f32 %v86, 1.442695
    %v89 = vpow.pop %v88
    %v90 = vmul.f32 %v87, 1.442695
    %v91 = vpow.pop %v90
    %v92 = vadd.f32 %v89, 1.0
    %v93 = vadd.f32 %v91, 1.0
    %v94 = vrcp.pop %v92
    %v95 = vmul.f32 1.0, %v94
    %v96 = vrcp.pop %v93
    %v97 = vmul.f32 1.0, %v96
    %v98 = vmul.f32 %v84, %v95
    %v99 = vmul.f32 %v85, %v97
    %v100 = vld [vmem:[%s1] sm:$0xff]
    %v101 = vld [vmem:[%s1 + $0x8] sm:$0xff]
    %v102 = vld [vmem:[%s1 + $0x10] sm:$0xff]
    %v103 = vld [vmem:[%s1 + $0x18] sm:$0xff]
    %v104 = vlaneseq
    %v105 = vshrl.u32 %v104, 7
    %v106 = vsub.s32 1, %v105
    %v107 = vrot.slane %v14, %v106
    %vm108 = vcmask 261120
    %v110 = vsel %vm108, %v98, 0
    %v113 = vsel %vm108, %v99, 0
    %115 = vmatprep.subr.mxu0 0.0
    %116 = vmatpush1.msra.mxu0 %v100
    %117 = vmatprep.subr.mxu0 0.0
    %118 = vmatpush1.msra.mxu0 %v101
    %119 = vmatprep.subr.mxu0 0.0
    %120 = vmatpush1.msra.mxu0 %v102
    %121 = vmatprep.subr.mxu0 0.0
    %122 = vmatpush1.msra.mxu0 %v103
    %123 = vmatprep.subr.mxu0 0.0
    %124 = vmatpush1.msra.mxu0 0.0
    %125 = vmatprep.subr.mxu0 0.0
    %126 = vmatpush1.msra.mxu0 0.0
    %127 = vmatprep.subr.mxu0 0.0
    %128 = vmatpush1.msra.mxu0 0.0
    %129 = vmatprep.subr.mxu0 0.0
    %130 = vmatpush1.msra.mxu0 0.0
    %131 = vmatprep.subr.mxu0 0.0
    %132 = vmatpush1.msra.mxu0 0.0
    %133 = vmatprep.subr.mxu0 0.0
    %134 = vmatpush1.msra.mxu0 0.0
    %135 = vmatprep.subr.mxu0 0.0
    %136 = vmatpush1.msra.mxu0 0.0
    %137 = vmatprep.subr.mxu0 0.0
    %138 = vmatpush1.msra.mxu0 0.0
    %139 = vmatprep.subr.mxu0 0.0
    %140 = vmatpush1.msra.mxu0 0.0
    %141 = vmatprep.subr.mxu0 0.0
    %142 = vmatpush1.msra.mxu0 0.0
    %143 = vmatprep.subr.mxu0 0.0
    %144 = vmatpush1.msra.mxu0 0.0
    %145 = vmatprep.subr.mxu0 0.0
    %146 = vmatpush1.msra.mxu0 0.0
    %147 = vmatprep.subr.mxu0 0.0
    %148 = vmatpush1.msra.mxu0 0.0
    %149 = vmatprep.subr.mxu0 0.0
    %150 = vmatpush1.msra.mxu0 0.0
    %151 = vmatprep.subr.mxu0 0.0
    %152 = vmatpush1.msra.mxu0 0.0
    %153 = vmatprep.subr.mxu0 0.0
    %154 = vmatpush1.msra.mxu0 0.0
    %155 = vmatprep.subr.mxu0 0.0
    %156 = vmatpush1.msra.mxu0 0.0
    %157 = vmatprep.subr.mxu0 0.0
    %158 = vmatpush1.msra.mxu0 0.0
    %159 = vmatprep.subr.mxu0 0.0
    %160 = vmatpush1.msra.mxu0 0.0
    %161 = vmatprep.subr.mxu0 0.0
    %162 = vmatpush1.msra.mxu0 0.0
    %163 = vmatprep.subr.mxu0 0.0
    %164 = vmatpush1.msra.mxu0 0.0
    %165 = vmatprep.subr.mxu0 0.0
    %166 = vmatpush1.msra.mxu0 0.0
    %167 = vmatprep.subr.mxu0 0.0
    %168 = vmatpush1.msra.mxu0 0.0
    %169 = vmatprep.subr.mxu0 0.0
    %170 = vmatpush1.msra.mxu0 0.0
    %171 = vmatprep.subr.mxu0 0.0
    %172 = vmatpush1.msra.mxu0 0.0
    %173 = vmatprep.subr.mxu0 0.0
    %174 = vmatpush1.msra.mxu0 0.0
    %175 = vmatprep.subr.mxu0 0.0
    %176 = vmatpush1.msra.mxu0 0.0
    %177 = vmatprep.subr.mxu0 0.0
    %178 = vmatpush1.msra.mxu0 0.0
    %179 = vmatprep.mubr.f32.mxu0 0.0
    %180 = vmatmul.mubr.f32.gmra.mrb[0].mxu0 %v110
    %v181 = vpop.f32.mrb[0].mxu0
    %v182 = vadd.f32 %v107, %v181
    %v183 = vpop.f32.mrb[0].mxu0
    %184 = vmatprep.mubr.f32.mxu0 0.0
    %185 = vmatmul.mubr.f32.gmra.mrb[0].mxu0 %v113
    %v186 = vpop.f32.mrb[0].mxu0
    %v187 = vadd.f32 %v107, %v186
    %v188 = vpop.f32.mrb[0].mxu0
    %189 = vdwg.mxu0
    %v190 = vxor.u32 %v182, 2147483648
    %v191 = vxor.u32 %v187, 2147483648
    %v192 = vmul.f32 %v190, 1.442695
    %v193 = vpow.pop %v192
    %v194 = vmul.f32 %v191, 1.442695
    %v195 = vpow.pop %v194
    %v196 = vadd.f32 %v193, 1.0
    %v197 = vadd.f32 %v195, 1.0
    %v198 = vrcp.pop %v196
    %v199 = vmul.f32 1.0, %v198
    %v200 = vrcp.pop %v197
    %v201 = vmul.f32 1.0, %v200
    %v202 = vmul.f32 %v182, %v199
    %v203 = vmul.f32 %v187, %v201
    %v204 = vld [vmem:[%s1 + $0x20] sm:$0xff]
    %v205 = vld [vmem:[%s1 + $0x28] sm:$0xff]
    %v206 = vld [vmem:[%s1 + $0x30] sm:$0xff]
    %v207 = vld [vmem:[%s1 + $0x38] sm:$0xff]
    %v208 = vlaneseq
    %v209 = vshrl.u32 %v208, 7
    %v210 = vsub.s32 2, %v209
    %v211 = vrot.slane %v14, %v210
    %v213 = vsel %vm108, %v202, 0
    %v216 = vsel %vm108, %v203, 0
    %218 = vmatprep.subr.mxu0 0.0
    %219 = vmatpush1.msra.mxu0 %v204
    %220 = vmatprep.subr.mxu0 0.0
    %221 = vmatpush1.msra.mxu0 %v205
    %222 = vmatprep.subr.mxu0 0.0
    %223 = vmatpush1.msra.mxu0 %v206
    %224 = vmatprep.subr.mxu0 0.0
    %225 = vmatpush1.msra.mxu0 %v207
    %226 = vmatprep.subr.mxu0 0.0
    %227 = vmatpush1.msra.mxu0 0.0
    %228 = vmatprep.subr.mxu0 0.0
    %229 = vmatpush1.msra.mxu0 0.0
    %230 = vmatprep.subr.mxu0 0.0
    %231 = vmatpush1.msra.mxu0 0.0
    %232 = vmatprep.subr.mxu0 0.0
    %233 = vmatpush1.msra.mxu0 0.0
    %234 = vmatprep.subr.mxu0 0.0
    %235 = vmatpush1.msra.mxu0 0.0
    %236 = vmatprep.subr.mxu0 0.0
    %237 = vmatpush1.msra.mxu0 0.0
    %238 = vmatprep.subr.mxu0 0.0
    %239 = vmatpush1.msra.mxu0 0.0
    %240 = vmatprep.subr.mxu0 0.0
    %241 = vmatpush1.msra.mxu0 0.0
    %242 = vmatprep.subr.mxu0 0.0
    %243 = vmatpush1.msra.mxu0 0.0
    %244 = vmatprep.subr.mxu0 0.0
    %245 = vmatpush1.msra.mxu0 0.0
    %246 = vmatprep.subr.mxu0 0.0
    %247 = vmatpush1.msra.mxu0 0.0
    %248 = vmatprep.subr.mxu0 0.0
    %249 = vmatpush1.msra.mxu0 0.0
    %250 = vmatprep.subr.mxu0 0.0
    %251 = vmatpush1.msra.mxu0 0.0
    %252 = vmatprep.subr.mxu0 0.0
    %253 = vmatpush1.msra.mxu0 0.0
    %254 = vmatprep.subr.mxu0 0.0
    %255 = vmatpush1.msra.mxu0 0.0
    %256 = vmatprep.subr.mxu0 0.0
    %257 = vmatpush1.msra.mxu0 0.0
    %258 = vmatprep.subr.mxu0 0.0
    %259 = vmatpush1.msra.mxu0 0.0
    %260 = vmatprep.subr.mxu0 0.0
    %261 = vmatpush1.msra.mxu0 0.0
    %262 = vmatprep.subr.mxu0 0.0
    %263 = vmatpush1.msra.mxu0 0.0
    %264 = vmatprep.subr.mxu0 0.0
    %265 = vmatpush1.msra.mxu0 0.0
    %266 = vmatprep.subr.mxu0 0.0
    %267 = vmatpush1.msra.mxu0 0.0
    %268 = vmatprep.subr.mxu0 0.0
    %269 = vmatpush1.msra.mxu0 0.0
    %270 = vmatprep.subr.mxu0 0.0
    %271 = vmatpush1.msra.mxu0 0.0
    %272 = vmatprep.subr.mxu0 0.0
    %273 = vmatpush1.msra.mxu0 0.0
    %274 = vmatprep.subr.mxu0 0.0
    %275 = vmatpush1.msra.mxu0 0.0
    %276 = vmatprep.subr.mxu0 0.0
    %277 = vmatpush1.msra.mxu0 0.0
    %278 = vmatprep.subr.mxu0 0.0
    %279 = vmatpush1.msra.mxu0 0.0
    %280 = vmatprep.subr.mxu0 0.0
    %281 = vmatpush1.msra.mxu0 0.0
    %282 = vmatprep.mubr.f32.mxu0 0.0
    %283 = vmatmul.mubr.f32.gmra.mrb[0].mxu0 %v213
    %v284 = vpop.f32.mrb[0].mxu0
    %v285 = vadd.f32 %v211, %v284
    %v286 = vpop.f32.mrb[0].mxu0
    %287 = vmatprep.mubr.f32.mxu0 0.0
    %288 = vmatmul.mubr.f32.gmra.mrb[0].mxu0 %v216
    %v289 = vpop.f32.mrb[0].mxu0
    %v290 = vadd.f32 %v211, %v289
    %v291 = vpop.f32.mrb[0].mxu0
    %292 = vdwg.mxu0
    %v293 = vxor.u32 %v285, 2147483648
    %v294 = vxor.u32 %v290, 2147483648
    %v295 = vmul.f32 %v293, 1.442695
    %v296 = vpow.pop %v295
    %v297 = vmul.f32 %v294, 1.442695
    %v298 = vpow.pop %v297
    %v299 = vadd.f32 %v296, 1.0
    %v300 = vadd.f32 %v298, 1.0
    %v301 = vrcp.pop %v299
    %v302 = vmul.f32 1.0, %v301
    %v303 = vrcp.pop %v300
    %v304 = vmul.f32 1.0, %v303
    %v305 = vmul.f32 %v285, %v302
    %v306 = vmul.f32 %v290, %v304
    %308 = vset.pattern.permute.xlu0 0
    %309 = vperm.xlu0 %308, %v14
    %v310 = vpop.permute.xlu0 %309
    %v311 = vrot.slane %v14, 3
    %v312 = vrot.slane %v310, 4
    %v314 = vsel %vm108, %v311, 0
    %v317 = vsel %vm108, %v305, 0
    %v320 = vsel %vm108, %v306, 0
    %322 = vmatprep.subr.mxu0 0.0
    %323 = vmatpush1.xpose.msra.mxu0 %v317
    %324 = vmatprep.subr.mxu0 0.0
    %325 = vmatpush1.xpose.msra.mxu0 %v320
    %326 = vmatprep.subr.mxu0 0.0
    %327 = vmatpush1.xpose.msra.mxu0 0.0
    %328 = vmatprep.subr.mxu0 0.0
    %329 = vmatpush1.xpose.msra.mxu0 0.0
    %330 = vmatprep.subr.mxu0 0.0
    %331 = vmatpush1.xpose.msra.mxu0 0.0
    %332 = vmatprep.subr.mxu0 0.0
    %333 = vmatpush1.xpose.msra.mxu0 0.0
    %334 = vmatprep.subr.mxu0 0.0
    %335 = vmatpush1.xpose.msra.mxu0 0.0
    %336 = vmatprep.subr.mxu0 0.0
    %337 = vmatpush1.xpose.msra.mxu0 0.0
    %338 = vmatprep.subr.mxu0 0.0
    %339 = vmatpush1.xpose.msra.mxu0 0.0
    %340 = vmatprep.subr.mxu0 0.0
    %341 = vmatpush1.xpose.msra.mxu0 0.0
    %342 = vmatprep.subr.mxu0 0.0
    %343 = vmatpush1.xpose.msra.mxu0 0.0
    %344 = vmatprep.subr.mxu0 0.0
    %345 = vmatpush1.xpose.msra.mxu0 0.0
    %346 = vmatprep.subr.mxu0 0.0
    %347 = vmatpush1.xpose.msra.mxu0 0.0
    %348 = vmatprep.subr.mxu0 0.0
    %349 = vmatpush1.xpose.msra.mxu0 0.0
    %350 = vmatprep.subr.mxu0 0.0
    %351 = vmatpush1.xpose.msra.mxu0 0.0
    %352 = vmatprep.subr.mxu0 0.0
    %353 = vmatpush1.xpose.msra.mxu0 0.0
    %354 = vmatprep.subr.mxu0 0.0
    %355 = vmatpush1.xpose.msra.mxu0 0.0
    %356 = vmatprep.subr.mxu0 0.0
    %357 = vmatpush1.xpose.msra.mxu0 0.0
    %358 = vmatprep.subr.mxu0 0.0
    %359 = vmatpush1.xpose.msra.mxu0 0.0
    %360 = vmatprep.subr.mxu0 0.0
    %361 = vmatpush1.xpose.msra.mxu0 0.0
    %362 = vmatprep.subr.mxu0 0.0
    %363 = vmatpush1.xpose.msra.mxu0 0.0
    %364 = vmatprep.subr.mxu0 0.0
    %365 = vmatpush1.xpose.msra.mxu0 0.0
    %366 = vmatprep.subr.mxu0 0.0
    %367 = vmatpush1.xpose.msra.mxu0 0.0
    %368 = vmatprep.subr.mxu0 0.0
    %369 = vmatpush1.xpose.msra.mxu0 0.0
    %370 = vmatprep.subr.mxu0 0.0
    %371 = vmatpush1.xpose.msra.mxu0 0.0
    %372 = vmatprep.subr.mxu0 0.0
    %373 = vmatpush1.xpose.msra.mxu0 0.0
    %374 = vmatprep.subr.mxu0 0.0
    %375 = vmatpush1.xpose.msra.mxu0 0.0
    %376 = vmatprep.subr.mxu0 0.0
    %377 = vmatpush1.xpose.msra.mxu0 0.0
    %378 = vmatprep.subr.mxu0 0.0
    %379 = vmatpush1.xpose.msra.mxu0 0.0
    %380 = vmatprep.subr.mxu0 0.0
    %381 = vmatpush1.xpose.msra.mxu0 0.0
    %382 = vmatprep.subr.mxu0 0.0
    %383 = vmatpush1.xpose.msra.mxu0 0.0
    %384 = vmatprep.subr.mxu0 0.0
    %385 = vmatpush1.xpose.msra.mxu0 0.0
    %386 = vmatprep.mubr.f32.mxu0 0.0
    %387 = vmatmul.mubr.f32.gmra.mrb[0].mxu0 %v314
    %v388 = vpop.f32.mrb[0].mxu0
    %v389 = vadd.f32 %v312, %v388
    %v390 = vpop.f32.mrb[0].mxu0
    %391 = vdwg.mxu0
    %vm392 = vcmask 122880
    %393 = vst.msk [vmem:[#allocation2] sm:$0x1] %vm392, %v389
    // Predicated region
    $region10: #{net_forward.1} parent=1 // pred_check
      _
    $region11: #{net_forward.1} parent=1 // pred_check_branch
      %395 = sbr.rel (0) target = $region13
    $region12: #{net_forward.1} parent=1 // pred_region
      %s397 = ssub.s32 16, 16
      %398 = vsyncadd [#allocation3], %s397
      %s400 = sshll.u32 [#allocation2], 4
      %s401 = int_to_ptr.vmem [resolvable:$true] %s400
      %403 = dma.vmem_to_hbm [thread:$0]  %s401, 16, %s2, [#allocation3]
    $region13: #{net_forward.1} parent=1 // pred_fallthru
      _
    // Predicated region
    $region14: #{net_forward.1} parent=1 // pred_check
      _
    $region15: #{net_forward.1} parent=1 // pred_check_branch
      %405 = sbr.rel (0) target = $region17
    $region16: #{net_forward.1} parent=1 // pred_region
      %406 = dma.done [#allocation3], 16
    $region17: #{net_forward.1} parent=1 // pred_fallthru
      _
    %407 = vsyncpa [#allocation3], 1

</llo_original>
